<compile_context>
chip_gen: v6e
topology: v6e:2x2x1
jax: 0.10.0
libtpu: 0.0.40
codegen_flags: <defaults>
</compile_context>

<pallas_src>
import functools

import jax
import jax.numpy as jnp
from jax import lax
from jax.experimental import pallas as pl
from jax.experimental.pallas import tpu as pltpu


def _round_up(x, m):
    return ((x + m - 1) // m) * m


def _pick_tile(total, max_tile):
    """Largest power-of-two-ish tile <= max_tile dividing total (fallback: total)."""
    t = min(max_tile, total)
    while t > 128 and total % t:
        t //= 2
    return t if total % t == 0 else total


# --------------------------- fused DETR kernel ------------------------------
def _detr_kernel(x_ref, we_ref, be_ref, q_ref, wh_ref, bh_ref, out_ref,
                 m_sc, l_sc, acc_sc, *, scale):
    # x_ref : (1, Cp, T_KV) bf16   channels-first input tile (lane-dense)
    # we_ref: (Cp, Dp)      bf16   encoder 1x1-conv projection
    # be_ref: (1, Dp)       f32
    # q_ref : (Nqp, Dp)     bf16   learned object queries
    # wh_ref: (Dp, Hp)      bf16   fused class|box head
    # bh_ref: (1, Hp)       f32
    # out_ref: (1, Nqp, Hp) f32
    kv = pl.program_id(1)

    @pl.when(kv == 0)
    def _():
        m_sc[...] = jnp.full(m_sc.shape, -jnp.inf, m_sc.dtype)
        l_sc[...] = jnp.zeros(l_sc.shape, l_sc.dtype)
        acc_sc[...] = jnp.zeros(acc_sc.shape, acc_sc.dtype)

    # ---- encoder (fused): project this KV tile's channels, bias + ReLU.
    # Contract the channel (sublane) axis of both operands directly.
    mem = lax.dot_general(
        x_ref[0], we_ref[...],
        dimension_numbers=(((0,), (0,)), ((), ())),
        preferred_element_type=jnp.float32)                      # (T_KV, Dp) f32
    mem = jnp.maximum(mem + be_ref[...], 0.0).astype(jnp.bfloat16)

    # ---- decoder: flash-style online-softmax cross-attention over KV tiles.
    s = lax.dot_general(
        q_ref[...], mem,
        dimension_numbers=(((1,), (1,)), ((), ())),              # contract D, no .T
        preferred_element_type=jnp.float32) * scale               # (Nqp, T_KV) f32

    m_prev = m_sc[...]
    m_new = jnp.maximum(m_prev, jnp.max(s, axis=-1, keepdims=True))
    alpha = jnp.exp(m_prev - m_new)
    p = jnp.exp(s - m_new)
    l_sc[...] = alpha * l_sc[...] + jnp.sum(p, axis=-1, keepdims=True)
    acc_sc[...] = alpha * acc_sc[...] + lax.dot_general(
        p.astype(jnp.bfloat16), mem,
        dimension_numbers=(((1,), (0,)), ((), ())),
        preferred_element_type=jnp.float32)                       # (Nqp, Dp) f32
    m_sc[...] = m_new

    @pl.when(kv == pl.num_programs(1) - 1)
    def _():
        ctx = acc_sc[...] * pl.reciprocal(l_sc[...], approx=True)  # (Nqp, Dp) f32
        head = lax.dot_general(
            ctx.astype(jnp.bfloat16), wh_ref[...],
            dimension_numbers=(((1,), (0,)), ((), ())),
            preferred_element_type=jnp.float32)                    # (Nqp, Hp) f32
        out_ref[0] = head + bh_ref[...]                            # lane-dense store


def detr_forward(x_bcs, params, *, d_model):
    """x_bcs: [B, Cp, HW] bf16 (channels-first) -> fused head [B, Nqp, Hp] f32."""
    B, Cp, HW = x_bcs.shape
    Dp = params["w_enc"].shape[1]
    Nqp = params["queries"].shape[0]
    Hp = params["w_head"].shape[1]
    t_kv = _pick_tile(HW, 512)
    kern = functools.partial(_detr_kernel, scale=1.0 / float(d_model) ** 0.5)
    return pl.pallas_call(
        kern,
        out_shape=jax.ShapeDtypeStruct((B, Nqp, Hp), jnp.float32),
        grid_spec=pltpu.PrefetchScalarGridSpec(
            num_scalar_prefetch=0,
            grid=(B, HW // t_kv),
            in_specs=[
                pl.BlockSpec((1, Cp, t_kv), lambda b, k: (b, 0, k)),
                pl.BlockSpec((Cp, Dp), lambda b, k: (0, 0)),
                pl.BlockSpec((1, Dp), lambda b, k: (0, 0)),
                pl.BlockSpec((Nqp, Dp), lambda b, k: (0, 0)),
                pl.BlockSpec((Dp, Hp), lambda b, k: (0, 0)),
                pl.BlockSpec((1, Hp), lambda b, k: (0, 0)),
            ],
            out_specs=pl.BlockSpec((1, Nqp, Hp), lambda b, k: (b, 0, 0)),
            scratch_shapes=[
                pltpu.VMEM((Nqp, 1), jnp.float32),     # running max
                pltpu.VMEM((Nqp, 1), jnp.float32),     # running sum
                pltpu.VMEM((Nqp, Dp), jnp.float32),    # running accumulator
            ],
        ),
        compiler_params=pltpu.CompilerParams(
            dimension_semantics=("parallel", "arbitrary"),
            vmem_limit_bytes=32 << 20),
    )(x_bcs, params["w_enc"], params["b_enc"], params["queries"],
      params["w_head"], params["b_head"])


# ------------------------------- DETR module --------------------------------
class DETR:
    """forward(x) = decoder(encoder(x)); targets unused at inference."""

    def __init__(self, params, meta):
        self.p = params
        self.m = meta

    def __call__(self, x_nchw, targets=None):
        # TODO(synk): targets / loss computation (training path) not implemented.
        B, C, H, W = x_nchw.shape
        m = self.m
        # Keep channels-first: NCHW -> [B, C, HW]; pad channels to padded width.
        x = x_nchw.reshape(B, C, H * W)
        if m["c_pad"] > C:
            x = jnp.pad(x, ((0, 0), (0, m["c_pad"] - C), (0, 0)))
        x = x.astype(jnp.bfloat16)

        head = detr_forward(x, self.p, d_model=m["d_model"])

        nq, ncls = m["n_queries"], m["n_classes"]
        logits = head[:, :nq, :ncls]
        boxes = jax.nn.sigmoid(head[:, :nq, ncls:ncls + 4])
        return {"pred_logits": logits, "pred_boxes": boxes}


def init_params(key, c_in, d_model, n_queries, n_classes):
    ks = jax.random.split(key, 4)
    s = lambda fan_in: 1.0 / jnp.sqrt(jnp.float32(fan_in))

    c_pad = _round_up(c_in, 8)               # sublane-aligned channel axis
    d_pad = _round_up(d_model, 128)          # lane-dense model dim
    nq_pad = _round_up(n_queries, 16)        # bf16 sublane packing
    head_dim = n_classes + 4
    head_pad = _round_up(head_dim, 128)      # fused lane-dense class|box head

    w_enc = jax.random.normal(ks[0], (c_in, d_model), jnp.float32) * s(c_in)
    b_enc = jnp.zeros((d_model,), jnp.float32)
    queries = jax.random.normal(ks[1], (n_queries, d_model), jnp.float32) * s(d_model)
    w_cls = jax.random.normal(ks[2], (d_model, n_classes), jnp.float32) * s(d_model)
    b_cls = jnp.zeros((n_classes,), jnp.float32)
    w_box = jax.random.normal(ks[3], (d_model, 4), jnp.float32) * s(d_model)
    b_box = jnp.zeros((4,), jnp.float32)

    # Fuse the heads: concat along the output (lane) dim, then zero-pad.
    w_head = jnp.concatenate([w_cls, w_box], axis=1)     # [D, NCLS+4]
    b_head = jnp.concatenate([b_cls, b_box], axis=0)     # [NCLS+4]

    pad2 = lambda a, r, c: jnp.pad(a, ((0, r - a.shape[0]), (0, c - a.shape[1])))
    params = {
        "w_enc": pad2(w_enc, c_pad, d_pad).astype(jnp.bfloat16),
        "b_enc": jnp.pad(b_enc, (0, d_pad - d_model))[None, :],            # f32 [1, Dp]
        "queries": pad2(queries, nq_pad, d_pad).astype(jnp.bfloat16),
        "w_head": pad2(w_head, d_pad, head_pad).astype(jnp.bfloat16),
        "b_head": jnp.pad(b_head, (0, head_pad - head_dim))[None, :],      # f32 [1, Hp]
    }
    meta = dict(c_in=c_in, c_pad=c_pad, d_model=d_model,
                n_queries=n_queries, n_classes=n_classes)
    return params, meta


def _reference_forward(params, meta, x_nchw):
    """Pure-JAX f32 reference (uses the same bf16-quantized params)."""
    B, C, H, W = x_nchw.shape
    m = meta
    x = x_nchw.reshape(B, C, H * W)
    x = jnp.pad(x, ((0, 0), (0, m["c_pad"] - C), (0, 0)))
    mem = jnp.maximum(
        jnp.einsum("bcs,cd->bsd", x, params["w_enc"].astype(jnp.float32))
        + params["b_enc"], 0.0)
    q = params["queries"].astype(jnp.float32) / jnp.sqrt(jnp.float32(m["d_model"]))
    scores = jnp.einsum("qd,bsd->bqs", q, mem)
    attn = jax.nn.softmax(scores, axis=-1)
    ctx = jnp.einsum("bqs,bsd->bqd", attn, mem)
    head = (jnp.einsum("bqd,dh->bqh", ctx, params["w_head"].astype(jnp.float32))
            + params["b_head"])
    nq, ncls = m["n_queries"], m["n_classes"]
    return head[:, :nq, :ncls], jax.nn.sigmoid(head[:, :nq, ncls:ncls + 4])


if __name__ == "__main__":
    B, C, H, W = 2, 4, 16, 16
    D_MODEL, N_QUERIES, N_CLASSES = 32, 8, 16

    key = jax.random.PRNGKey(0)
    k_x, k_p = jax.random.split(key)
    x = jax.random.normal(k_x, (B, C, H, W), jnp.float32)
    params, meta = init_params(k_p, C, D_MODEL, N_QUERIES, N_CLASSES)

    model = DETR(params, meta)
    out = model(x)
    jax.block_until_ready(out)

    assert out["pred_logits"].shape == (B, N_QUERIES, N_CLASSES)
    assert out["pred_boxes"].shape == (B, N_QUERIES, 4)
    assert bool(jnp.all(jnp.isfinite(out["pred_logits"])))
    assert bool(jnp.all((out["pred_boxes"] >= 0.0) & (out["pred_boxes"] <= 1.0)))

    # Loose numerical check against the pure-JAX f32 reference (bf16 matmuls +
    # approx reciprocal introduce ~1% error).
    ref_logits, ref_boxes = _reference_forward(params, meta, x)
    assert float(jnp.max(jnp.abs(out["pred_logits"] - ref_logits))) < 0.1
    assert float(jnp.max(jnp.abs(out["pred_boxes"] - ref_boxes))) < 0.05

    print("KERNEL_OK")
</pallas_src>

<mosaic_0001>
module attributes {stable_mosaic.version = 11 : i64} {
  func.func @_detr_kernel(%arg0: i32, %arg1: i32, %arg2: memref<1x8x256xbf16, #tpu.memory_space<vmem>>, %arg3: memref<8x128xbf16, #tpu.memory_space<vmem>>, %arg4: memref<1x128xf32, #tpu.memory_space<vmem>>, %arg5: memref<16x128xbf16, #tpu.memory_space<vmem>>, %arg6: memref<128x128xbf16, #tpu.memory_space<vmem>>, %arg7: memref<1x128xf32, #tpu.memory_space<vmem>>, %arg8: memref<1x16x128xf32, #tpu.memory_space<vmem>>, %arg9: memref<16x1xf32, #tpu.memory_space<vmem>>, %arg10: memref<16x1xf32, #tpu.memory_space<vmem>>, %arg11: memref<16x128xf32, #tpu.memory_space<vmem>>) attributes {dimension_semantics = [#tpu.dimension_semantics<parallel>, #tpu.dimension_semantics<arbitrary>], iteration_bounds = array<i64: 2, 1>, scalar_prefetch = 0 : i64, scratch_operands = 3 : i64, tpu.core_type = #tpu.core_type<tc>, window_params = [{transform_indices = @transform_0, window_bounds = array<i64: 1, 8, 256>}, {pipeline_mode = #tpu.pipeline_mode<synchronous>, transform_indices = @transform_1, window_bounds = array<i64: 8, 128>}, {pipeline_mode = #tpu.pipeline_mode<synchronous>, transform_indices = @transform_2, window_bounds = array<i64: 1, 128>}, {pipeline_mode = #tpu.pipeline_mode<synchronous>, transform_indices = @transform_3, window_bounds = array<i64: 16, 128>}, {pipeline_mode = #tpu.pipeline_mode<synchronous>, transform_indices = @transform_4, window_bounds = array<i64: 128, 128>}, {pipeline_mode = #tpu.pipeline_mode<synchronous>, transform_indices = @transform_5, window_bounds = array<i64: 1, 128>}, {transform_indices = @transform_6, window_bounds = array<i64: 1, 16, 128>}]} {
    %c0_i32 = arith.constant 0 : i32
    %0 = arith.cmpi eq, %arg1, %c0_i32 : i32
    %1 = arith.extui %0 : i1 to i32
    %c0_i32_0 = arith.constant 0 : i32
    %2 = arith.cmpi ne, %1, %c0_i32_0 : i32
    scf.if %2 {
      %cst_29 = arith.constant 0xFF800000 : f32
      %43 = vector.broadcast %cst_29 : f32 to vector<16x1xf32>
      %c0_30 = arith.constant 0 : index
      %c0_31 = arith.constant 0 : index
      %44 = vector.load %arg9[%c0_30, %c0_31] : memref<16x1xf32, #tpu.memory_space<vmem>>, vector<16x1xf32>
      tpu.vector_store %arg9[%c0_30, %c0_31], %43 {strides = array<i32>} : memref<16x1xf32, #tpu.memory_space<vmem>>, vector<16x1xf32>,
      %cst_32 = arith.constant 0.000000e+00 : f32
      %45 = vector.broadcast %cst_32 : f32 to vector<16x1xf32>
      %c0_33 = arith.constant 0 : index
      %c0_34 = arith.constant 0 : index
      %46 = vector.load %arg10[%c0_33, %c0_34] : memref<16x1xf32, #tpu.memory_space<vmem>>, vector<16x1xf32>
      tpu.vector_store %arg10[%c0_33, %c0_34], %45 {strides = array<i32>} : memref<16x1xf32, #tpu.memory_space<vmem>>, vector<16x1xf32>,
      %cst_35 = arith.constant 0.000000e+00 : f32
      %47 = vector.broadcast %cst_35 : f32 to vector<16x128xf32>
      %c0_36 = arith.constant 0 : index
      %c0_37 = arith.constant 0 : index
      %48 = vector.load %arg11[%c0_36, %c0_37] : memref<16x128xf32, #tpu.memory_space<vmem>>, vector<16x128xf32>
      tpu.vector_store %arg11[%c0_36, %c0_37], %47 {strides = array<i32>} : memref<16x128xf32, #tpu.memory_space<vmem>>, vector<16x128xf32>,
    } else {
    }
    %c0 = arith.constant 0 : index
    %c0_1 = arith.constant 0 : index
    %c0_2 = arith.constant 0 : index
    %3 = vector.load %arg2[%c0, %c0_1, %c0_2] : memref<1x8x256xbf16, #tpu.memory_space<vmem>>, vector<1x8x256xbf16>
    %4 = vector.shape_cast %3 : vector<1x8x256xbf16> to vector<8x256xbf16>
    %c0_3 = arith.constant 0 : index
    %c0_4 = arith.constant 0 : index
    %5 = vector.load %arg3[%c0_3, %c0_4] : memref<8x128xbf16, #tpu.memory_space<vmem>>, vector<8x128xbf16>
    %cst = arith.constant dense<0.000000e+00> : vector<256x128xf32>
    %6 = tpu.matmul %4, %5, %cst {dimension_numbers = #tpu.dot_dimension_numbers<[0], [0], [1], [1], [0, 1, 1, 1], [], []>} : vector<8x256xbf16>, vector<8x128xbf16>, vector<256x128xf32> -> vector<256x128xf32>
    %c0_5 = arith.constant 0 : index
    %c0_6 = arith.constant 0 : index
    %7 = vector.load %arg4[%c0_5, %c0_6] : memref<1x128xf32, #tpu.memory_space<vmem>>, vector<1x128xf32>
    %8 = vector.broadcast %7 : vector<1x128xf32> to vector<256x128xf32>
    %9 = arith.addf %6, %8 : vector<256x128xf32>
    %cst_7 = arith.constant 0.000000e+00 : f32
    %10 = vector.broadcast %cst_7 : f32 to vector<256x128xf32>
    %11 = arith.maximumf %9, %10 : vector<256x128xf32>
    %12 = arith.truncf %11 : vector<256x128xf32> to vector<256x128xbf16>
    %c0_8 = arith.constant 0 : index
    %c0_9 = arith.constant 0 : index
    %13 = vector.load %arg5[%c0_8, %c0_9] : memref<16x128xbf16, #tpu.memory_space<vmem>>, vector<16x128xbf16>
    %cst_10 = arith.constant dense<0.000000e+00> : vector<16x256xf32>
    %14 = tpu.matmul %13, %12, %cst_10 {dimension_numbers = #tpu.dot_dimension_numbers<[1], [1], [0], [0], [0, 0, 1, 0], [], []>} : vector<16x128xbf16>, vector<256x128xbf16>, vector<16x256xf32> -> vector<16x256xf32>
    %cst_11 = arith.constant 0.176776692 : f32
    %15 = vector.broadcast %cst_11 : f32 to vector<16x256xf32>
    %16 = arith.mulf %14, %15 : vector<16x256xf32>
    %c0_12 = arith.constant 0 : index
    %c0_13 = arith.constant 0 : index
    %17 = vector.load %arg9[%c0_12, %c0_13] : memref<16x1xf32, #tpu.memory_space<vmem>>, vector<16x1xf32>
    %cst_14 = arith.constant dense<0xFF800000> : vector<16xf32>
    %18 = vector.multi_reduction <maximumf>, %16, %cst_14 [1] : vector<16x256xf32> to vector<16xf32>
    %19 = vector.shape_cast %18 : vector<16xf32> to vector<16x1xf32>
    %20 = arith.maximumf %17, %19 : vector<16x1xf32>
    %21 = arith.subf %17, %20 : vector<16x1xf32>
    %22 = math.exp %21 : vector<16x1xf32>
    %23 = vector.broadcast %20 : vector<16x1xf32> to vector<16x256xf32>
    %24 = arith.subf %16, %23 : vector<16x256xf32>
    %25 = math.exp %24 : vector<16x256xf32>
    %c0_15 = arith.constant 0 : index
    %c0_16 = arith.constant 0 : index
    %26 = vector.load %arg10[%c0_15, %c0_16] : memref<16x1xf32, #tpu.memory_space<vmem>>, vector<16x1xf32>
    %27 = arith.mulf %22, %26 : vector<16x1xf32>
    %cst_17 = arith.constant dense<0.000000e+00> : vector<16xf32>
    %28 = vector.multi_reduction <add>, %25, %cst_17 [1] : vector<16x256xf32> to vector<16xf32>
    %29 = vector.shape_cast %28 : vector<16xf32> to vector<16x1xf32>
    %30 = arith.addf %27, %29 : vector<16x1xf32>
    %c0_18 = arith.constant 0 : index
    %c0_19 = arith.constant 0 : index
    %31 = vector.load %arg10[%c0_18, %c0_19] : memref<16x1xf32, #tpu.memory_space<vmem>>, vector<16x1xf32>
    tpu.vector_store %arg10[%c0_18, %c0_19], %30 {strides = array<i32>} : memref<16x1xf32, #tpu.memory_space<vmem>>, vector<16x1xf32>,
    %c0_20 = arith.constant 0 : index
    %c0_21 = arith.constant 0 : index
    %32 = vector.load %arg11[%c0_20, %c0_21] : memref<16x128xf32, #tpu.memory_space<vmem>>, vector<16x128xf32>
    %33 = vector.broadcast %22 : vector<16x1xf32> to vector<16x128xf32>
    %34 = arith.mulf %33, %32 : vector<16x128xf32>
    %35 = arith.truncf %25 : vector<16x256xf32> to vector<16x256xbf16>
    %cst_22 = arith.constant dense<0.000000e+00> : vector<16x128xf32>
    %36 = tpu.matmul %35, %12, %cst_22 {dimension_numbers = #tpu.dot_dimension_numbers<[1], [0], [0], [1], [0, 0, 1, 1], [], []>} : vector<16x256xbf16>, vector<256x128xbf16>, vector<16x128xf32> -> vector<16x128xf32>
    %37 = arith.addf %34, %36 : vector<16x128xf32>
    %c0_23 = arith.constant 0 : index
    %c0_24 = arith.constant 0 : index
    %38 = vector.load %arg11[%c0_23, %c0_24] : memref<16x128xf32, #tpu.memory_space<vmem>>, vector<16x128xf32>
    tpu.vector_store %arg11[%c0_23, %c0_24], %37 {strides = array<i32>} : memref<16x128xf32, #tpu.memory_space<vmem>>, vector<16x128xf32>,
    %c0_25 = arith.constant 0 : index
    %c0_26 = arith.constant 0 : index
    %39 = vector.load %arg9[%c0_25, %c0_26] : memref<16x1xf32, #tpu.memory_space<vmem>>, vector<16x1xf32>
    tpu.vector_store %arg9[%c0_25, %c0_26], %20 {strides = array<i32>} : memref<16x1xf32, #tpu.memory_space<vmem>>, vector<16x1xf32>,
    %c0_i32_27 = arith.constant 0 : i32
    %40 = arith.cmpi eq, %arg1, %c0_i32_27 : i32
    %41 = arith.extui %40 : i1 to i32
    %c0_i32_28 = arith.constant 0 : i32
    %42 = arith.cmpi ne, %41, %c0_i32_28 : i32
    scf.if %42 {
      %c0_29 = arith.constant 0 : index
      %c0_30 = arith.constant 0 : index
      %43 = vector.load %arg11[%c0_29, %c0_30] : memref<16x128xf32, #tpu.memory_space<vmem>>, vector<16x128xf32>
      %c0_31 = arith.constant 0 : index
      %c0_32 = arith.constant 0 : index
      %44 = vector.load %arg10[%c0_31, %c0_32] : memref<16x1xf32, #tpu.memory_space<vmem>>, vector<16x1xf32>
      %45 = tpu.reciprocal %44 {approx = true} : vector<16x1xf32> -> vector<16x1xf32>
      %46 = vector.broadcast %45 : vector<16x1xf32> to vector<16x128xf32>
      %47 = arith.mulf %43, %46 : vector<16x128xf32>
      %48 = arith.truncf %47 : vector<16x128xf32> to vector<16x128xbf16>
      %c0_33 = arith.constant 0 : index
      %c0_34 = arith.constant 0 : index
      %49 = vector.load %arg6[%c0_33, %c0_34] : memref<128x128xbf16, #tpu.memory_space<vmem>>, vector<128x128xbf16>
      %cst_35 = arith.constant dense<0.000000e+00> : vector<16x128xf32>
      %50 = tpu.matmul %48, %49, %cst_35 {dimension_numbers = #tpu.dot_dimension_numbers<[1], [0], [0], [1], [0, 0, 1, 1], [], []>} : vector<16x128xbf16>, vector<128x128xbf16>, vector<16x128xf32> -> vector<16x128xf32>
      %c0_36 = arith.constant 0 : index
      %c0_37 = arith.constant 0 : index
      %51 = vector.load %arg7[%c0_36, %c0_37] : memref<1x128xf32, #tpu.memory_space<vmem>>, vector<1x128xf32>
      %52 = vector.broadcast %51 : vector<1x128xf32> to vector<16x128xf32>
      %53 = arith.addf %50, %52 : vector<16x128xf32>
      %c0_38 = arith.constant 0 : index
      %c0_39 = arith.constant 0 : index
      %c0_40 = arith.constant 0 : index
      %54 = vector.load %arg8[%c0_38, %c0_39, %c0_40] : memref<1x16x128xf32, #tpu.memory_space<vmem>>, vector<1x16x128xf32>
      %55 = vector.shape_cast %54 : vector<1x16x128xf32> to vector<16x128xf32>
      %56 = vector.shape_cast %53 : vector<16x128xf32> to vector<1x16x128xf32>
      tpu.vector_store %arg8[%c0_38, %c0_39, %c0_40], %56 {strides = array<i32>} : memref<1x16x128xf32, #tpu.memory_space<vmem>>, vector<1x16x128xf32>,
    } else {
    }
    return
  }
  func.func @transform_0(%arg0: i32, %arg1: i32) -> (i32, i32, i32) {
    %c0_i32 = arith.constant 0 : i32
    %c0_i32_0 = arith.constant 0 : i32
    return %arg0, %c0_i32, %arg1 : i32, i32, i32
  }
  func.func @transform_1(%arg0: i32, %arg1: i32) -> (i32, i32) {
    %c0_i32 = arith.constant 0 : i32
    %c0_i32_0 = arith.constant 0 : i32
    %c0_i32_1 = arith.constant 0 : i32
    return %c0_i32, %c0_i32_0 : i32, i32
  }
  func.func @transform_2(%arg0: i32, %arg1: i32) -> (i32, i32) {
    %c0_i32 = arith.constant 0 : i32
    %c0_i32_0 = arith.constant 0 : i32
    %c0_i32_1 = arith.constant 0 : i32
    return %c0_i32, %c0_i32_0 : i32, i32
  }
  func.func @transform_3(%arg0: i32, %arg1: i32) -> (i32, i32) {
    %c0_i32 = arith.constant 0 : i32
    %c0_i32_0 = arith.constant 0 : i32
    %c0_i32_1 = arith.constant 0 : i32
    return %c0_i32, %c0_i32_0 : i32, i32
  }
  func.func @transform_4(%arg0: i32, %arg1: i32) -> (i32, i32) {
    %c0_i32 = arith.constant 0 : i32
    %c0_i32_0 = arith.constant 0 : i32
    %c0_i32_1 = arith.constant 0 : i32
    return %c0_i32, %c0_i32_0 : i32, i32
  }
  func.func @transform_5(%arg0: i32, %arg1: i32) -> (i32, i32) {
    %c0_i32 = arith.constant 0 : i32
    %c0_i32_0 = arith.constant 0 : i32
    %c0_i32_1 = arith.constant 0 : i32
    return %c0_i32, %c0_i32_0 : i32, i32
  }
  func.func @transform_6(%arg0: i32, %arg1: i32) -> (i32, i32, i32) {
    %c0_i32 = arith.constant 0 : i32
    %c0_i32_0 = arith.constant 0 : i32
    %c0_i32_1 = arith.constant 0 : i32
    return %arg0, %c0_i32, %c0_i32_0 : i32, i32, i32
  }
}

</mosaic_0001>

<llo_original>
// kernel: tpu_custom_call.1
$region0: #{tpu_custom_call.1}
  #allocation0 [shape = 'u32[]', space=smem, size = 0x4, offset = 0x4, fixed_abs, tag = 'smem constant byte address 0x4 - core index']
  #allocation1 [shape = 'u32[144,128]{1,0:T(1,128)}', space=vmem, size = 0x12000, scoped, tag = 'internal scratch']
  #allocation2 [shape = 'f32[16,1]{1,0:T(8,128)}', space=vmem, size = 0x2000, scoped, tag = 'scratch operand']
  #allocation3 [shape = 'f32[16,1]{1,0:T(8,128)}', space=vmem, size = 0x2000, scoped, tag = 'scratch operand']
  #allocation4 [shape = 'f32[16,128]{1,0:T(8,128)}', space=vmem, size = 0x2000, scoped, tag = 'scratch operand']
  %s0 = inlined_call_operand.hbm [shape: bf16[2,8,256], index: 0, kind: input, shape index: {}]
  %s1 = inlined_call_operand.hbm [shape: bf16[8,128], index: 1, kind: input, shape index: {}]
  %s2 = inlined_call_operand.vmem [shape: f32[1,128], index: 2, kind: input, shape index: {}]
  %s3 = inlined_call_operand.hbm [shape: bf16[16,128], index: 3, kind: input, shape index: {}]
  %s4 = inlined_call_operand.hbm [shape: bf16[128,128], index: 4, kind: input, shape index: {}]
  %s5 = inlined_call_operand.vmem [shape: f32[1,128], index: 5, kind: input, shape index: {}]
  %s6 = inlined_call_operand.hbm [shape: f32[2,16,128], index: 6, kind: output, shape index: {}]
  %s7 = sld [smem:[#allocation0]]
  $region81: #{tpu_custom_call.1} parent=0
    _
  %s9 = ssub.s32 1, %s7
  %s10 = scalar_select 0, %s9, %s7
  $region1: #{tpu_custom_call.1} parent=0
    #allocation5 [shape = 'u8[8192]{0}', space=vmem, size = 0x2000, scoped, tag = 'input window, operand 0']
    #allocation6 [shape = 's32[2]{0}', space=sflag, size = 0x8, scoped, tag = 'scoped memory for tpu_custom_call.1']
    #allocation7 [shape = 's32[2]{0}', space=sflag, size = 0x8, scoped, tag = 'scoped memory for tpu_custom_call.1']
    #allocation8 [shape = 'u8[2048]{0}', space=vmem, size = 0x800, scoped, tag = 'input window, operand 1, single buffered']
    #allocation9 [shape = 's32[1]{0}', space=sflag, size = 0x4, scoped, tag = 'scoped memory for tpu_custom_call.1']
    #allocation10 [shape = 'u8[4096]{0}', space=vmem, size = 0x1000, scoped, tag = 'input window, operand 3, single buffered']
    #allocation11 [shape = 'u8[32768]{0}', space=vmem, size = 0x8000, scoped, tag = 'input window, operand 4, single buffered']
    #allocation12 [shape = 's32[1]{0}', space=sflag, size = 0x4, scoped, tag = 'scoped memory for tpu_custom_call.1']
    #allocation13 [shape = 'u8[16384]{0}', space=vmem, size = 0x4000, scoped, tag = 'output window, operand 0']
    %11 = vsyncpa [#allocation6], 0
    %s12 = scalar_lea.sflag [#allocation6], 1
    %13 = vsyncpa %s12, 0
    %14 = vsyncpa [#allocation9], 0
    %15 = vsyncpa [#allocation12], 0
    %16 = vsyncpa [#allocation7], 0
    %s17 = scalar_lea.sflag [#allocation7], 1
    %18 = vsyncpa %s17, 0
    loop: start=0, step=1, limit=4
    $region2: #{tpu_custom_call.1} parent=1 // loop_pre_header
      _
    $region3: #{tpu_custom_call.1} parent=1 // loop_header
      %s20 = sphi 0, %s24
      %p21 = scmp.ge.s32.totalorder %s20, 4
      %s27 = sphi 0, %s39
      %s28 = sphi 0, %s35
      %s29 = sphi 0, %s27
      %s30 = sphi 0, %s28
      %s31 = sphi 0, %s29
      %s32 = sphi 0, %s30
      %s44 = sphi 0, %s46
      %s47 = sphi 0, %s44
      %s48 = sphi 0, %s47
      %s64 = sphi 0, %s48
      %s68 = sphi 0, %s68
      %s70 = sphi 0, %s68
      %s71 = sphi 0, %s70
      %s85 = sphi 0, %s71
      %s89 = sphi 0, %s89
      %s91 = sphi 0, %s89
      %s92 = sphi 0, %s91
      %s106 = sphi 0, %s92
      %s110 = sphi 0, %s110
      %s112 = sphi 0, %s110
      %s113 = sphi 0, %s112
      %s127 = sphi 0, %s113
      %s131 = sphi 0, %s131
      %s133 = sphi 0, %s131
      %s134 = sphi 0, %s133
      %s148 = sphi 0, %s134
      %s152 = sphi 0, %s152
      %s154 = sphi 0, %s152
      %s155 = sphi 0, %s154
      %s169 = sphi 0, %s155
      %s175 = sphi 0, %s177
      %s178 = sphi 0, %s175
      %s179 = sphi 0, %s178
      %s195 = sphi 0, %s179
    $region4: #{tpu_custom_call.1} parent=1 // loop_header_branch
      %23 = sbr.rel (%p21) target = $region8
    $region5: #{tpu_custom_call.1} parent=1 // loop_body
      %s25 = ssub.s32 %s20, 1
      %s26 = ssub.s32 %s20, 2
      %s33 = sadd.s32 1, %s28
      %p34 = scmp.ge.s32.totalorder %s33, 1
      %s35 = scalar_select %p34, 0, %s33
      %s36 = sadd.s32 1, %s27
      %s37 = scalar_select %p34, %s36, %s27
      %p38 = scmp.ge.s32.totalorder %s37, 2
      %s39 = scalar_select %p38, 0, %s37
      %s40 = ssub.s32 %s27, %s39
      %s41 = ssub.s32 %s28, %s35
      %s42 = sor.u32 %s40, %s41
      %p43 = scmp.eq.s32.totalorder %s42, 0
      %s45 = sadd.s32 %s44, 1
      %s46 = scalar_select %p43, %s44, %s45
      %p49 = pneg %p43
      %p50 = scmp.eq.s32.totalorder %s20, 1
      %p51 = por %p49, %p50
      %p52 = scmp.ne.s32.totalorder %s44, %s47
      %p53 = scmp.eq.s32.totalorder %s20, 0
      %p54 = por %p52, %p53
      %p55 = scmp.ne.s32.totalorder %s44, %s47
      %p56 = scmp.eq.s32.totalorder %s25, 1
      %p57 = por %p55, %p56
      %p58 = scmp.ne.s32.totalorder %s47, %s48
      %p59 = scmp.eq.s32.totalorder %s25, 0
      %p60 = por %p58, %p59
      %p61 = scmp.ne.s32.totalorder %s47, %s48
      %p62 = scmp.eq.s32.totalorder %s26, 1
      %p63 = por %p61, %p62
      %p65 = scmp.ne.s32.totalorder %s48, %s64
      %p66 = scmp.eq.s32.totalorder %s26, 0
      %p67 = por %p65, %p66
      %s69 = sadd.s32 %s68, 1
      %p72 = scmp.eq.s32.totalorder %s20, 1
      %p73 = scmp.ne.s32.totalorder %s68, %s70
      %p74 = scmp.eq.s32.totalorder %s20, 0
      %p75 = por %p73, %p74
      %p76 = scmp.ne.s32.totalorder %s68, %s70
      %p77 = scmp.eq.s32.totalorder %s25, 1
      %p78 = por %p76, %p77
      %p79 = scmp.ne.s32.totalorder %s70, %s71
      %p80 = scmp.eq.s32.totalorder %s25, 0
      %p81 = por %p79, %p80
      %p82 = scmp.ne.s32.totalorder %s70, %s71
      %p83 = scmp.eq.s32.totalorder %s26, 1
      %p84 = por %p82, %p83
      %p86 = scmp.ne.s32.totalorder %s71, %s85
      %p87 = scmp.eq.s32.totalorder %s26, 0
      %p88 = por %p86, %p87
      %s90 = sadd.s32 %s89, 1
      %p93 = scmp.eq.s32.totalorder %s20, 1
      %p94 = scmp.ne.s32.totalorder %s89, %s91
      %p95 = scmp.eq.s32.totalorder %s20, 0
      %p96 = por %p94, %p95
      %p97 = scmp.ne.s32.totalorder %s89, %s91
      %p98 = scmp.eq.s32.totalorder %s25, 1
      %p99 = por %p97, %p98
      %p100 = scmp.ne.s32.totalorder %s91, %s92
      %p101 = scmp.eq.s32.totalorder %s25, 0
      %p102 = por %p100, %p101
      %p103 = scmp.ne.s32.totalorder %s91, %s92
      %p104 = scmp.eq.s32.totalorder %s26, 1
      %p105 = por %p103, %p104
      %p107 = scmp.ne.s32.totalorder %s92, %s106
      %p108 = scmp.eq.s32.totalorder %s26, 0
      %p109 = por %p107, %p108
      %s111 = sadd.s32 %s110, 1
      %p114 = scmp.eq.s32.totalorder %s20, 1
      %p115 = scmp.ne.s32.totalorder %s110, %s112
      %p116 = scmp.eq.s32.totalorder %s20, 0
      %p117 = por %p115, %p116
      %p118 = scmp.ne.s32.totalorder %s110, %s112
      %p119 = scmp.eq.s32.totalorder %s25, 1
      %p120 = por %p118, %p119
      %p121 = scmp.ne.s32.totalorder %s112, %s113
      %p122 = scmp.eq.s32.totalorder %s25, 0
      %p123 = por %p121, %p122
      %p124 = scmp.ne.s32.totalorder %s112, %s113
      %p125 = scmp.eq.s32.totalorder %s26, 1
      %p126 = por %p124, %p125
      %p128 = scmp.ne.s32.totalorder %s113, %s127
      %p129 = scmp.eq.s32.totalorder %s26, 0
      %p130 = por %p128, %p129
      %s132 = sadd.s32 %s131, 1
      %p135 = scmp.eq.s32.totalorder %s20, 1
      %p136 = scmp.ne.s32.totalorder %s131, %s133
      %p137 = scmp.eq.s32.totalorder %s20, 0
      %p138 = por %p136, %p137
      %p139 = scmp.ne.s32.totalorder %s131, %s133
      %p140 = scmp.eq.s32.totalorder %s25, 1
      %p141 = por %p139, %p140
      %p142 = scmp.ne.s32.totalorder %s133, %s134
      %p143 = scmp.eq.s32.totalorder %s25, 0
      %p144 = por %p142, %p143
      %p145 = scmp.ne.s32.totalorder %s133, %s134
      %p146 = scmp.eq.s32.totalorder %s26, 1
      %p147 = por %p145, %p146
      %p149 = scmp.ne.s32.totalorder %s134, %s148
      %p150 = scmp.eq.s32.totalorder %s26, 0
      %p151 = por %p149, %p150
      %s153 = sadd.s32 %s152, 1
      %p156 = scmp.eq.s32.totalorder %s20, 1
      %p157 = scmp.ne.s32.totalorder %s152, %s154
      %p158 = scmp.eq.s32.totalorder %s20, 0
      %p159 = por %p157, %p158
      %p160 = scmp.ne.s32.totalorder %s152, %s154
      %p161 = scmp.eq.s32.totalorder %s25, 1
      %p162 = por %p160, %p161
      %p163 = scmp.ne.s32.totalorder %s154, %s155
      %p164 = scmp.eq.s32.totalorder %s25, 0
      %p165 = por %p163, %p164
      %p166 = scmp.ne.s32.totalorder %s154, %s155
      %p167 = scmp.eq.s32.totalorder %s26, 1
      %p168 = por %p166, %p167
      %p170 = scmp.ne.s32.totalorder %s155, %s169
      %p171 = scmp.eq.s32.totalorder %s26, 0
      %p172 = por %p170, %p171
      %s173 = ssub.s32 %s27, %s39
      %p174 = scmp.eq.s32.totalorder %s173, 0
      %s176 = sadd.s32 %s175, 1
      %s177 = scalar_select %p174, %s175, %s176
      %p180 = pneg %p174
      %p181 = scmp.eq.s32.totalorder %s20, 1
      %p182 = por %p180, %p181
      %p183 = scmp.ne.s32.totalorder %s175, %s178
      %p184 = scmp.eq.s32.totalorder %s20, 0
      %p185 = por %p183, %p184
      %p186 = scmp.ne.s32.totalorder %s175, %s178
      %p187 = scmp.eq.s32.totalorder %s25, 1
      %p188 = por %p186, %p187
      %p189 = scmp.ne.s32.totalorder %s178, %s179
      %p190 = scmp.eq.s32.totalorder %s25, 0
      %p191 = por %p189, %p190
      %p192 = scmp.ne.s32.totalorder %s178, %s179
      %p193 = scmp.eq.s32.totalorder %s26, 1
      %p194 = por %p192, %p193
      %p196 = scmp.ne.s32.totalorder %s179, %s195
      %p197 = scmp.eq.s32.totalorder %s26, 0
      %p198 = por %p196, %p197
      %p199 = scmp.le.s32.totalorder 1, %s20
      %p200 = scmp.lt.s32.totalorder %s20, 3
      %p201 = pnand %p199, %p200
      %p202 = pneg %p201
      // Predicated region
      $region9: #{tpu_custom_call.1} parent=5 // pred_check
        _
      $region10: #{tpu_custom_call.1} parent=5 // pred_check_branch
        %204 = sbr.rel (%p201) target = $region12
      $region11: #{tpu_custom_call.1} parent=5 // pred_region
        %s205 = ssub.s32 %s20, 1
        // Predicated region
        $region13: #{tpu_custom_call.1} parent=11 // pred_check
          %p206 = pneg %p81
        $region14: #{tpu_custom_call.1} parent=11 // pred_check_branch
          %208 = sbr.rel (%p206) target = $region16
        $region15: #{tpu_custom_call.1} parent=11 // pred_region
          %s210 = ssub.s32 64, 64
          %211 = vsyncadd [#allocation9], %s210
          %s213 = sshll.u32 [#allocation8], 4
          %s214 = int_to_ptr.vmem [resolvable:$true] %s213
          %216 = dma.hbm_to_vmem [thread:$0]  %s1, 64, %s214, [#allocation9]
        $region16: #{tpu_custom_call.1} parent=11 // pred_fallthru
          _
        // Predicated region
        $region17: #{tpu_custom_call.1} parent=11 // pred_check
          %p217 = pneg %p102
        $region18: #{tpu_custom_call.1} parent=11 // pred_check_branch
          %219 = sbr.rel (%p217) target = $region20
        $region19: #{tpu_custom_call.1} parent=11 // pred_region
          _
        $region20: #{tpu_custom_call.1} parent=11 // pred_fallthru
          _
        // Predicated region
        $region21: #{tpu_custom_call.1} parent=11 // pred_check
          %p220 = pneg %p123
        $region22: #{tpu_custom_call.1} parent=11 // pred_check_branch
          %222 = sbr.rel (%p220) target = $region24
        $region23: #{tpu_custom_call.1} parent=11 // pred_region
          %s224 = ssub.s32 128, 128
          %225 = vsyncadd [#allocation9], %s224
          %s226 = sshll.u32 [#allocation10], 4
          %s227 = int_to_ptr.vmem [resolvable:$true] %s226
          %232 = dma.hbm_to_vmem [thread:$0]  %s3, 128, %s227, [#allocation9], 64, 64, 4
        $region24: #{tpu_custom_call.1} parent=11 // pred_fallthru
          _
        // Predicated region
        $region25: #{tpu_custom_call.1} parent=11 // pred_check
          %p233 = pneg %p144
        $region26: #{tpu_custom_call.1} parent=11 // pred_check_branch
          %235 = sbr.rel (%p233) target = $region28
        $region27: #{tpu_custom_call.1} parent=11 // pred_region
          %s237 = ssub.s32 1024, 1024
          %238 = vsyncadd [#allocation12], %s237
          %s239 = sshll.u32 [#allocation11], 4
          %s240 = int_to_ptr.vmem [resolvable:$true] %s239
          %245 = dma.hbm_to_vmem [thread:$0]  %s4, 1024, %s240, [#allocation12], 64, 64, 4
        $region28: #{tpu_custom_call.1} parent=11 // pred_fallthru
          _
        // Predicated region
        $region29: #{tpu_custom_call.1} parent=11 // pred_check
          %p246 = pneg %p165
        $region30: #{tpu_custom_call.1} parent=11 // pred_check_branch
          %248 = sbr.rel (%p246) target = $region32
        $region31: #{tpu_custom_call.1} parent=11 // pred_region
          _
        $region32: #{tpu_custom_call.1} parent=11 // pred_fallthru
          _
      $region12: #{tpu_custom_call.1} parent=5 // pred_fallthru
        _
      %p249 = scmp.lt.s32.totalorder %s20, 2
      // Predicated region
      $region33: #{tpu_custom_call.1} parent=5 // pred_check
        %p250 = pneg %p249
      $region34: #{tpu_custom_call.1} parent=5 // pred_check_branch
        %252 = sbr.rel (%p250) target = $region36
      $region35: #{tpu_custom_call.1} parent=5 // pred_region
        // Predicated region
        $region37: #{tpu_custom_call.1} parent=35 // pred_check
          %p253 = pneg %p54
        $region38: #{tpu_custom_call.1} parent=35 // pred_check_branch
          %255 = sbr.rel (%p253) target = $region40
        $region39: #{tpu_custom_call.1} parent=35 // pred_region
          %s256 = sand.u32 %s44, 1
          %s257 = scalar_lea.sflag [#allocation6], %s256
          %s258 = sand.u32 %s44, 1
          %s259 = smul.addr %s258, 8
          %s260 = scalar_lea.vmem [#allocation5], %s259
          %s261 = smul.u32 2, %s28
          %s263 = ssub.s32 128, 128
          %264 = vsyncadd %s257, %s263
          %s265 = smul.addr %s27, 2
          %s266 = sadd.s32 %s261, %s265
          %s267 = smul.addr %s266, 64
          %s268 = scalar_lea.hbm %s0, %s267
          %s270 = sshll.u32 %s260, 4
          %s271 = int_to_ptr.vmem [resolvable:$true] %s270
          %273 = dma.hbm_to_vmem [thread:$0]  %s268, 128, %s271, %s257
        $region40: #{tpu_custom_call.1} parent=35 // pred_fallthru
          _
      $region36: #{tpu_custom_call.1} parent=5 // pred_fallthru
        _
      %p274 = scmp.le.s32.totalorder 1, %s20
      %p275 = scmp.lt.s32.totalorder %s20, 3
      %p276 = pnand %p274, %p275
      %p277 = pneg %p276
      // Predicated region
      $region41: #{tpu_custom_call.1} parent=5 // pred_check
        _
      $region42: #{tpu_custom_call.1} parent=5 // pred_check_branch
        %279 = sbr.rel (%p276) target = $region44
      $region43: #{tpu_custom_call.1} parent=5 // pred_region
        %s280 = ssub.s32 %s20, 1
        %s281 = sand.u32 %s47, 1
        %s282 = scalar_lea.sflag [#allocation6], %s281
        %s283 = sand.u32 %s47, 1
        %s284 = smul.addr %s283, 8
        %s285 = scalar_lea.vmem [#allocation5], %s284
        // Predicated region
        $region45: #{tpu_custom_call.1} parent=43 // pred_check
          %p286 = pneg %p60
        $region46: #{tpu_custom_call.1} parent=43 // pred_check_branch
          %288 = sbr.rel (%p286) target = $region48
        $region47: #{tpu_custom_call.1} parent=43 // pred_region
          %289 = dma.done %s282, 128
        $region48: #{tpu_custom_call.1} parent=43 // pred_fallthru
          _
        // Predicated region
        $region49: #{tpu_custom_call.1} parent=43 // pred_check
          %p290 = pneg %p81
        $region50: #{tpu_custom_call.1} parent=43 // pred_check_branch
          %292 = sbr.rel (%p290) target = $region52
        $region51: #{tpu_custom_call.1} parent=43 // pred_region
          %293 = dma.done [#allocation9], 64
        $region52: #{tpu_custom_call.1} parent=43 // pred_fallthru
          _
        // Predicated region
        $region53: #{tpu_custom_call.1} parent=43 // pred_check
          %p294 = pneg %p123
        $region54: #{tpu_custom_call.1} parent=43 // pred_check_branch
          %296 = sbr.rel (%p294) target = $region56
        $region55: #{tpu_custom_call.1} parent=43 // pred_region
          %297 = dma.done [#allocation9], 128
        $region56: #{tpu_custom_call.1} parent=43 // pred_fallthru
          _
        // Predicated region
        $region57: #{tpu_custom_call.1} parent=43 // pred_check
          %p298 = pneg %p144
        $region58: #{tpu_custom_call.1} parent=43 // pred_check_branch
          %300 = sbr.rel (%p298) target = $region60
        $region59: #{tpu_custom_call.1} parent=43 // pred_region
          %301 = dma.done [#allocation12], 1024
        $region60: #{tpu_custom_call.1} parent=43 // pred_fallthru
          _
        %s302 = sand.u32 %s47, 1
        %s303 = scalar_lea.sflag [#allocation6], %s302
        %s304 = sand.u32 %s47, 1
        %s305 = smul.addr %s304, 8
        %s306 = scalar_lea.vmem [#allocation5], %s305
        %p307 = pneg %p60
        %p308 = pneg %p57
        %p309 = pneg %p81
        %p310 = pneg %p78
        %p311 = pneg %p102
        %p312 = pneg %p99
        %p313 = pneg %p123
        %p314 = pneg %p120
        %p315 = pneg %p144
        %p316 = pneg %p141
        %p317 = pneg %p165
        %p318 = pneg %p162
        %p319 = pneg %p191
        %p320 = pneg %p188
        %s321 = sand.u32 %s178, 1
        %s322 = scalar_lea.sflag [#allocation7], %s321
        %s323 = sand.u32 %s178, 1
        %s324 = smul.addr %s323, 16
        %s325 = scalar_lea.vmem [#allocation13], %s324
        %s326 = smul.u32 2, %s30
        %p328 = scmp.eq.s32.totalorder %s30, 0
        // Predicated region
        $region61: #{tpu_custom_call.1} parent=43 // pred_check
          %p329 = pneg %p328
        $region62: #{tpu_custom_call.1} parent=43 // pred_check_branch
          %331 = sbr.rel (%p329) target = $region64
        $region63: #{tpu_custom_call.1} parent=43 // pred_region
          %vm332 = vcmask 7168
          %333 = vst.msk [vmem:[#allocation2] sm:$0xff] %vm332, -inf
          %334 = vst.msk [vmem:[#allocation2 + $0x8] sm:$0xff] %vm332, -inf
          %335 = vst.msk [vmem:[#allocation3] sm:$0xff] %vm332, 0.0
          %336 = vst.msk [vmem:[#allocation3 + $0x8] sm:$0xff] %vm332, 0.0
          %337 = vst [vmem:[#allocation4] sm:$0xff] 0.0
          %338 = vst [vmem:[#allocation4 + $0x8] sm:$0xff] 0.0
        $region64: #{tpu_custom_call.1} parent=43 // pred_fallthru
          _
        %v339 = vld [vmem:[%s285] sm:$0xff]
        %v340 = vld [vmem:[#allocation8] sm:$0xf]
        %v341 = vld [vmem:[%s2] sm:$0x1]
        %v343 = vlaneseq
        %v344 = vshrl.u32 %v343, 7
        %v345 = vsub.s32 0, %v344
        %v346 = vrot.slane %v341, %v345
        %v349 = vunpack.c.l.b16 %v339
        %v350 = vunpack.c.h.b16 %v339
        %v351 = vpack.c.b16 %v349, %v349
        %v352 = vpack.c.b16 %v350, %v350
        %355 = vxpose.xlu0.c.b16.start [1/8] %v351, 128
        %356 = vxpose.xlu0.c.b16.cont [2/8] 0, 128
        %357 = vxpose.xlu0.c.b16.cont [3/8] 0, 128
        %358 = vxpose.xlu0.c.b16.cont [4/8] 0, 128
        %359 = vxpose.xlu0.c.b16.cont [5/8] 0, 128
        %360 = vxpose.xlu0.c.b16.cont [6/8] 0, 128
        %361 = vxpose.xlu0.c.b16.cont [7/8] 0, 128
        %362 = vxpose.xlu0.c.b16.end [8/8] 0, 128
        %v363 = vpop.trf.xlu0
        %v364 = vpop.trf.xlu0
        %v365 = vpop.trf.xlu0
        %v366 = vpop.trf.xlu0
        %v367 = vpop.trf.xlu0
        %v368 = vpop.trf.xlu0
        %v369 = vpop.trf.xlu0
        %v370 = vpop.trf.xlu0
        %371 = vxpose.xlu0.c.b16.start [1/8] %v352, 128
        %372 = vxpose.xlu0.c.b16.cont [2/8] 0, 128
        %373 = vxpose.xlu0.c.b16.cont [3/8] 0, 128
        %374 = vxpose.xlu0.c.b16.cont [4/8] 0, 128
        %375 = vxpose.xlu0.c.b16.cont [5/8] 0, 128
        %376 = vxpose.xlu0.c.b16.cont [6/8] 0, 128
        %377 = vxpose.xlu0.c.b16.cont [7/8] 0, 128
        %378 = vxpose.xlu0.c.b16.end [8/8] 0, 128
        %v379 = vpop.trf.xlu0
        %v380 = vpop.trf.xlu0
        %v381 = vpop.trf.xlu0
        %v382 = vpop.trf.xlu0
        %v383 = vpop.trf.xlu0
        %v384 = vpop.trf.xlu0
        %v385 = vpop.trf.xlu0
        %v386 = vpop.trf.xlu0
        %vm387 = vcmask 64512
        %v389 = vsel %vm387, %v363, 0
        %v392 = vsel %vm387, %v364, 0
        %v395 = vsel %vm387, %v365, 0
        %v398 = vsel %vm387, %v366, 0
        %v401 = vsel %vm387, %v367, 0
        %v404 = vsel %vm387, %v368, 0
        %v407 = vsel %vm387, %v369, 0
        %v410 = vsel %vm387, %v370, 0
        %v413 = vsel %vm387, %v379, 0
        %v416 = vsel %vm387, %v380, 0
        %v419 = vsel %vm387, %v381, 0
        %v422 = vsel %vm387, %v382, 0
        %v425 = vsel %vm387, %v383, 0
        %v428 = vsel %vm387, %v384, 0
        %v431 = vsel %vm387, %v385, 0
        %v434 = vsel %vm387, %v386, 0
        %vm436 = vcmask 1043456
        %v438 = vsel %vm436, %v340, 0
        %440 = vmatprep.subr.bf16.mxu0 0
        %441 = vmatpush1.bf16.msra.mxu0 0
        %442 = vmatprep.subr.bf16.mxu0 0
        %443 = vmatpush1.bf16.msra.mxu0 0
        %444 = vmatprep.subr.bf16.mxu0 0
        %445 = vmatpush1.bf16.msra.mxu0 0
        %446 = vmatprep.subr.bf16.mxu0 0
        %447 = vmatpush1.bf16.msra.mxu0 0
        %448 = vmatprep.subr.bf16.mxu0 0
        %449 = vmatpush1.bf16.msra.mxu0 0
        %450 = vmatprep.subr.bf16.mxu0 0
        %451 = vmatpush1.bf16.msra.mxu0 0
        %452 = vmatprep.subr.bf16.mxu0 0
        %453 = vmatpush1.bf16.msra.mxu0 0
        %454 = vmatprep.subr.bf16.mxu0 0
        %455 = vmatpush1.bf16.msra.mxu0 %v438
        %456 = vmatprep.subr.bf16.mxu0 0
        %457 = vmatpush2.bf16.msra.mxu0 0
        %458 = vmatprep.subr.bf16.mxu0 0
        %459 = vmatpush2.bf16.msra.mxu0 0
        %460 = vmatprep.subr.bf16.mxu0 0
        %461 = vmatpush2.bf16.msra.mxu0 0
        %462 = vmatprep.subr.bf16.mxu0 0
        %463 = vmatpush2.bf16.msra.mxu0 0
        %464 = vmatprep.subr.bf16.mxu0 0
        %465 = vmatpush2.bf16.msra.mxu0 0
        %466 = vmatprep.subr.bf16.mxu0 0
        %467 = vmatpush2.bf16.msra.mxu0 0
        %468 = vmatprep.subr.bf16.mxu0 0
        %469 = vmatpush2.bf16.msra.mxu0 0
        %470 = vmatprep.subr.bf16.mxu0 0
        %471 = vmatpush2.bf16.msra.mxu0 0
        %472 = vmatprep.mubr.bf16.mxu0 0
        %473 = vmatmul.mubr.bf16.gmra.mxu0 %v389
        %v474 = vpop.f32.mrf.mxu0
        %v475 = vadd.f32 %v346, %v474
        %v476 = vpop.f32.mrf.mxu0
        %v477 = vpop.f32.mrf.mxu0
        %v478 = vadd.f32 %v346, %v477
        %v479 = vpop.f32.mrf.mxu0
        %480 = vmatprep.mubr.bf16.mxu0 0
        %481 = vmatmul.mubr.bf16.gmra.mxu0 %v392
        %v482 = vpop.f32.mrf.mxu0
        %v483 = vadd.f32 %v346, %v482
        %v484 = vpop.f32.mrf.mxu0
        %v485 = vpop.f32.mrf.mxu0
        %v486 = vadd.f32 %v346, %v485
        %v487 = vpop.f32.mrf.mxu0
        %488 = vmatprep.mubr.bf16.mxu0 0
        %489 = vmatmul.mubr.bf16.gmra.mxu0 %v395
        %v490 = vpop.f32.mrf.mxu0
        %v491 = vadd.f32 %v346, %v490
        %v492 = vpop.f32.mrf.mxu0
        %v493 = vpop.f32.mrf.mxu0
        %v494 = vadd.f32 %v346, %v493
        %v495 = vpop.f32.mrf.mxu0
        %496 = vmatprep.mubr.bf16.mxu0 0
        %497 = vmatmul.mubr.bf16.gmra.mxu0 %v398
        %v498 = vpop.f32.mrf.mxu0
        %v499 = vadd.f32 %v346, %v498
        %v500 = vpop.f32.mrf.mxu0
        %v501 = vpop.f32.mrf.mxu0
        %v502 = vadd.f32 %v346, %v501
        %v503 = vpop.f32.mrf.mxu0
        %504 = vmatprep.mubr.bf16.mxu0 0
        %505 = vmatmul.mubr.bf16.gmra.mxu0 %v401
        %v506 = vpop.f32.mrf.mxu0
        %v507 = vadd.f32 %v346, %v506
        %v508 = vpop.f32.mrf.mxu0
        %v509 = vpop.f32.mrf.mxu0
        %v510 = vadd.f32 %v346, %v509
        %v511 = vpop.f32.mrf.mxu0
        %512 = vmatprep.mubr.bf16.mxu0 0
        %513 = vmatmul.mubr.bf16.gmra.mxu0 %v404
        %v514 = vpop.f32.mrf.mxu0
        %v515 = vadd.f32 %v346, %v514
        %v516 = vpop.f32.mrf.mxu0
        %v517 = vpop.f32.mrf.mxu0
        %v518 = vadd.f32 %v346, %v517
        %v519 = vpop.f32.mrf.mxu0
        %520 = vmatprep.mubr.bf16.mxu0 0
        %521 = vmatmul.mubr.bf16.gmra.mxu0 %v407
        %v522 = vpop.f32.mrf.mxu0
        %v523 = vadd.f32 %v346, %v522
        %v524 = vpop.f32.mrf.mxu0
        %v525 = vpop.f32.mrf.mxu0
        %v526 = vadd.f32 %v346, %v525
        %v527 = vpop.f32.mrf.mxu0
        %528 = vmatprep.mubr.bf16.mxu0 0
        %529 = vmatmul.mubr.bf16.gmra.mxu0 %v410
        %v530 = vpop.f32.mrf.mxu0
        %v531 = vadd.f32 %v346, %v530
        %v532 = vpop.f32.mrf.mxu0
        %v533 = vpop.f32.mrf.mxu0
        %v534 = vadd.f32 %v346, %v533
        %v535 = vpop.f32.mrf.mxu0
        %536 = vmatprep.mubr.bf16.mxu0 0
        %537 = vmatmul.mubr.bf16.gmra.mxu0 %v413
        %v538 = vpop.f32.mrf.mxu0
        %v539 = vadd.f32 %v346, %v538
        %v540 = vpop.f32.mrf.mxu0
        %v541 = vpop.f32.mrf.mxu0
        %v542 = vadd.f32 %v346, %v541
        %v543 = vpop.f32.mrf.mxu0
        %544 = vmatprep.mubr.bf16.mxu0 0
        %545 = vmatmul.mubr.bf16.gmra.mxu0 %v416
        %v546 = vpop.f32.mrf.mxu0
        %v547 = vadd.f32 %v346, %v546
        %v548 = vpop.f32.mrf.mxu0
        %v549 = vpop.f32.mrf.mxu0
        %v550 = vadd.f32 %v346, %v549
        %v551 = vpop.f32.mrf.mxu0
        %552 = vmatprep.mubr.bf16.mxu0 0
        %553 = vmatmul.mubr.bf16.gmra.mxu0 %v419
        %v554 = vpop.f32.mrf.mxu0
        %v555 = vadd.f32 %v346, %v554
        %v556 = vpop.f32.mrf.mxu0
        %v557 = vpop.f32.mrf.mxu0
        %v558 = vadd.f32 %v346, %v557
        %v559 = vpop.f32.mrf.mxu0
        %560 = vmatprep.mubr.bf16.mxu0 0
        %561 = vmatmul.mubr.bf16.gmra.mxu0 %v422
        %v562 = vpop.f32.mrf.mxu0
        %v563 = vadd.f32 %v346, %v562
        %v564 = vpop.f32.mrf.mxu0
        %v565 = vpop.f32.mrf.mxu0
        %v566 = vadd.f32 %v346, %v565
        %v567 = vpop.f32.mrf.mxu0
        %568 = vmatprep.mubr.bf16.mxu0 0
        %569 = vmatmul.mubr.bf16.gmra.mxu0 %v425
        %v570 = vpop.f32.mrf.mxu0
        %v571 = vadd.f32 %v346, %v570
        %v572 = vpop.f32.mrf.mxu0
        %v573 = vpop.f32.mrf.mxu0
        %v574 = vadd.f32 %v346, %v573
        %v575 = vpop.f32.mrf.mxu0
        %576 = vmatprep.mubr.bf16.mxu0 0
        %577 = vmatmul.mubr.bf16.gmra.mxu0 %v428
        %v578 = vpop.f32.mrf.mxu0
        %v579 = vadd.f32 %v346, %v578
        %v580 = vpop.f32.mrf.mxu0
        %v581 = vpop.f32.mrf.mxu0
        %v582 = vadd.f32 %v346, %v581
        %v583 = vpop.f32.mrf.mxu0
        %584 = vmatprep.mubr.bf16.mxu0 0
        %585 = vmatmul.mubr.bf16.gmra.mxu0 %v431
        %v586 = vpop.f32.mrf.mxu0
        %v587 = vadd.f32 %v346, %v586
        %v588 = vpop.f32.mrf.mxu0
        %v589 = vpop.f32.mrf.mxu0
        %v590 = vadd.f32 %v346, %v589
        %v591 = vpop.f32.mrf.mxu0
        %592 = vmatprep.mubr.bf16.mxu0 0
        %593 = vmatmul.mubr.bf16.gmra.mxu0 %v434
        %v594 = vpop.f32.mrf.mxu0
        %v595 = vadd.f32 %v346, %v594
        %v596 = vpop.f32.mrf.mxu0
        %v597 = vpop.f32.mrf.mxu0
        %v598 = vadd.f32 %v346, %v597
        %v599 = vpop.f32.mrf.mxu0
        %600 = vdwg.mxu0
        %v601 = vmax.f32 %v475, 0.0
        %v602 = vmax.f32 %v478, 0.0
        %v603 = vmax.f32 %v483, 0.0
        %v604 = vmax.f32 %v486, 0.0
        %v605 = vmax.f32 %v491, 0.0
        %v606 = vmax.f32 %v494, 0.0
        %v607 = vmax.f32 %v499, 0.0
        %v608 = vmax.f32 %v502, 0.0
        %v609 = vmax.f32 %v507, 0.0
        %v610 = vmax.f32 %v510, 0.0
        %v611 = vmax.f32 %v515, 0.0
        %v612 = vmax.f32 %v518, 0.0
        %v613 = vmax.f32 %v523, 0.0
        %v614 = vmax.f32 %v526, 0.0
        %v615 = vmax.f32 %v531, 0.0
        %v616 = vmax.f32 %v534, 0.0
        %v617 = vmax.f32 %v539, 0.0
        %v618 = vmax.f32 %v542, 0.0
        %v619 = vmax.f32 %v547, 0.0
        %v620 = vmax.f32 %v550, 0.0
        %v621 = vmax.f32 %v555, 0.0
        %v622 = vmax.f32 %v558, 0.0
        %v623 = vmax.f32 %v563, 0.0
        %v624 = vmax.f32 %v566, 0.0
        %v625 = vmax.f32 %v571, 0.0
        %v626 = vmax.f32 %v574, 0.0
        %v627 = vmax.f32 %v579, 0.0
        %v628 = vmax.f32 %v582, 0.0
        %v629 = vmax.f32 %v587, 0.0
        %v630 = vmax.f32 %v590, 0.0
        %v631 = vmax.f32 %v595, 0.0
        %v632 = vmax.f32 %v598, 0.0
        %v633 = vpack.c.bf16 %v602, %v601
        %v634 = vpack.c.bf16 %v604, %v603
        %v635 = vpack.c.bf16 %v606, %v605
        %v636 = vpack.c.bf16 %v608, %v607
        %v637 = vpack.c.bf16 %v610, %v609
        %v638 = vpack.c.bf16 %v612, %v611
        %v639 = vpack.c.bf16 %v614, %v613
        %v640 = vpack.c.bf16 %v616, %v615
        %v641 = vpack.c.bf16 %v618, %v617
        %v642 = vpack.c.bf16 %v620, %v619
        %v643 = vpack.c.bf16 %v622, %v621
        %v644 = vpack.c.bf16 %v624, %v623
        %v645 = vpack.c.bf16 %v626, %v625
        %v646 = vpack.c.bf16 %v628, %v627
        %v647 = vpack.c.bf16 %v630, %v629
        %v648 = vpack.c.bf16 %v632, %v631
        %v649 = vld [vmem:[#allocation10] sm:$0xf]
        %v650 = vld [vmem:[#allocation10 + $0x4] sm:$0xf]
        %v653 = vunpack.c.l.b16 %v649
        %v654 = vunpack.c.l.b16 %v650
        %v655 = vpack.c.b16 %v654, %v653
        %657 = vmatprep.subr.bf16.mxu0 0
        %658 = vmatpush1.bf16.xpose.msra.mxu0 %v640
        %659 = vmatprep.subr.bf16.mxu0 0
        %660 = vmatpush1.bf16.xpose.msra.mxu0 %v639
        %661 = vmatprep.subr.bf16.mxu0 0
        %662 = vmatpush1.bf16.xpose.msra.mxu0 %v638
        %663 = vmatprep.subr.bf16.mxu0 0
        %664 = vmatpush1.bf16.xpose.msra.mxu0 %v637
        %665 = vmatprep.subr.bf16.mxu0 0
        %666 = vmatpush1.bf16.xpose.msra.mxu0 %v636
        %667 = vmatprep.subr.bf16.mxu0 0
        %668 = vmatpush1.bf16.xpose.msra.mxu0 %v635
        %669 = vmatprep.subr.bf16.mxu0 0
        %670 = vmatpush1.bf16.xpose.msra.mxu0 %v634
        %671 = vmatprep.subr.bf16.mxu0 0
        %672 = vmatpush1.bf16.xpose.msra.mxu0 %v633
        %673 = vmatprep.subr.bf16.mxu0 0
        %674 = vmatpush2.bf16.xpose.msra.mxu0 %v648
        %675 = vmatprep.subr.bf16.mxu0 0
        %676 = vmatpush2.bf16.xpose.msra.mxu0 %v647
        %677 = vmatprep.subr.bf16.mxu0 0
        %678 = vmatpush2.bf16.xpose.msra.mxu0 %v646
        %679 = vmatprep.subr.bf16.mxu0 0
        %680 = vmatpush2.bf16.xpose.msra.mxu0 %v645
        %681 = vmatprep.subr.bf16.mxu0 0
        %682 = vmatpush2.bf16.xpose.msra.mxu0 %v644
        %683 = vmatprep.subr.bf16.mxu0 0
        %684 = vmatpush2.bf16.xpose.msra.mxu0 %v643
        %685 = vmatprep.subr.bf16.mxu0 0
        %686 = vmatpush2.bf16.xpose.msra.mxu0 %v642
        %687 = vmatprep.subr.bf16.mxu0 0
        %688 = vmatpush2.bf16.xpose.msra.mxu0 %v641
        %689 = vmatprep.mubr.bf16.mxu0 0
        %690 = vmatmul.mubr.bf16.gmra.mxu0 %v655
        %v691 = vpop.f32.mrf.mxu0
        %v692 = vadd.f32 0.0, %v691
        %v693 = vpop.f32.mrf.mxu0
        %v694 = vadd.f32 0.0, %v693
        %v695 = vpop.f32.mrf.mxu0
        %v696 = vadd.f32 0.0, %v695
        %v697 = vpop.f32.mrf.mxu0
        %v698 = vadd.f32 0.0, %v697
        %699 = vdwg.mxu0
        %v700 = vmul.f32 %v692, 0.17677669
        %v701 = vmul.f32 %v694, 0.17677669
        %v702 = vmul.f32 %v696, 0.17677669
        %v703 = vmul.f32 %v698, 0.17677669
        %v704 = vld [vmem:[#allocation2] sm:$0xff]
        %v705 = vld [vmem:[#allocation2 + $0x8] sm:$0xff]
        %v706 = vmax.f32 %v700, %v701
        %707 = vmax.xlane.f32.xlu0 %v706
        %v708 = vpop.xlane.xlu0 %707
        %v709 = vmax.f32 %v702, %v703
        %710 = vmax.xlane.f32.xlu0 %v709
        %v711 = vpop.xlane.xlu0 %710
        %v712 = vmax.f32 %v704, %v708
        %v713 = vmax.f32 %v705, %v711
        %v714 = vsub.f32 %v704, %v712
        %v715 = vsub.f32 %v705, %v713
        %v716 = vmul.f32 %v714, 1.442695
        %v717 = vpow.pop %v716
        %v718 = vmul.f32 %v715, 1.442695
        %v719 = vpow.pop %v718
        %721 = vset.pattern.permute.xlu0 0
        %722 = vperm.xlu0 %721, %v712
        %v723 = vpop.permute.xlu0 %722
        %726 = vset.pattern.permute.xlu0 0
        %727 = vperm.xlu0 %726, %v713
        %v728 = vpop.permute.xlu0 %727
        %v730 = vsub.f32 %v700, %v723
        %v731 = vsub.f32 %v701, %v723
        %v732 = vsub.f32 %v702, %v728
        %v733 = vsub.f32 %v703, %v728
        %v734 = vmul.f32 %v730, 1.442695
        %v735 = vpow.pop %v734
        %v736 = vmul.f32 %v731, 1.442695
        %v737 = vpow.pop %v736
        %v738 = vmul.f32 %v732, 1.442695
        %v739 = vpow.pop %v738
        %v740 = vmul.f32 %v733, 1.442695
        %v741 = vpow.pop %v740
        %v742 = vld [vmem:[#allocation3] sm:$0xff]
        %v743 = vld [vmem:[#allocation3 + $0x8] sm:$0xff]
        %v744 = vmul.f32 %v717, %v742
        %v745 = vmul.f32 %v719, %v743
        %v746 = vadd.f32 %v735, %v737
        %747 = vadd.xlane.f32.xlu0 %v746
        %v748 = vpop.xlane.xlu0 %747
        %v749 = vadd.f32 %v739, %v741
        %750 = vadd.xlane.f32.xlu0 %v749
        %v751 = vpop.xlane.xlu0 %750
        %v752 = vadd.f32 %v744, %v748
        %v753 = vadd.f32 %v745, %v751
        %vm754 = vcmask 7168
        %755 = vst.msk [vmem:[#allocation3] sm:$0xff] %vm754, %v752
        %756 = vst.msk [vmem:[#allocation3 + $0x8] sm:$0xff] %vm754, %v753
        %v757 = vld [vmem:[#allocation4] sm:$0xff]
        %v758 = vld [vmem:[#allocation4 + $0x8] sm:$0xff]
        %760 = vset.pattern.permute.xlu0 0
        %761 = vperm.xlu0 %760, %v717
        %v762 = vpop.permute.xlu0 %761
        %765 = vset.pattern.permute.xlu0 0
        %766 = vperm.xlu0 %765, %v719
        %v767 = vpop.permute.xlu0 %766
        %v769 = vmul.f32 %v762, %v757
        %v770 = vmul.f32 %v767, %v758
        %v771 = vpack.c.bf16 %v739, %v735
        %v772 = vpack.c.bf16 %v741, %v737
        %773 = vmatprep.subr.bf16.mxu0 0
        %774 = vmatpush1.bf16.msra.mxu0 %v640
        %775 = vmatprep.subr.bf16.mxu0 0
        %776 = vmatpush1.bf16.msra.mxu0 %v639
        %777 = vmatprep.subr.bf16.mxu0 0
        %778 = vmatpush1.bf16.msra.mxu0 %v638
        %779 = vmatprep.subr.bf16.mxu0 0
        %780 = vmatpush1.bf16.msra.mxu0 %v637
        %781 = vmatprep.subr.bf16.mxu0 0
        %782 = vmatpush1.bf16.msra.mxu0 %v636
        %783 = vmatprep.subr.bf16.mxu0 0
        %784 = vmatpush1.bf16.msra.mxu0 %v635
        %785 = vmatprep.subr.bf16.mxu0 0
        %786 = vmatpush1.bf16.msra.mxu0 %v634
        %787 = vmatprep.subr.bf16.mxu0 0
        %788 = vmatpush1.bf16.msra.mxu0 %v633
        %789 = vmatprep.subr.bf16.mxu0 0
        %790 = vmatpush2.bf16.msra.mxu0 %v648
        %791 = vmatprep.subr.bf16.mxu0 0
        %792 = vmatpush2.bf16.msra.mxu0 %v647
        %793 = vmatprep.subr.bf16.mxu0 0
        %794 = vmatpush2.bf16.msra.mxu0 %v646
        %795 = vmatprep.subr.bf16.mxu0 0
        %796 = vmatpush2.bf16.msra.mxu0 %v645
        %797 = vmatprep.subr.bf16.mxu0 0
        %798 = vmatpush2.bf16.msra.mxu0 %v644
        %799 = vmatprep.subr.bf16.mxu0 0
        %800 = vmatpush2.bf16.msra.mxu0 %v643
        %801 = vmatprep.subr.bf16.mxu0 0
        %802 = vmatpush2.bf16.msra.mxu0 %v642
        %803 = vmatprep.subr.bf16.mxu0 0
        %804 = vmatpush2.bf16.msra.mxu0 %v641
        %805 = vmatprep.mubr.bf16.mxu0 %v772
        %806 = vmatmul.mubr.bf16.gmra.mxu0 %v771
        %v807 = vpop.f32.mrf.mxu0
        %v808 = vadd.f32 0.0, %v807
        %v809 = vpop.f32.mrf.mxu0
        %v810 = vpop.f32.mrf.mxu0
        %v811 = vadd.f32 0.0, %v810
        %v812 = vpop.f32.mrf.mxu0
        %813 = vdwg.mxu0
        %v814 = vadd.f32 %v769, %v808
        %v815 = vadd.f32 %v770, %v811
        %816 = vst [vmem:[#allocation4] sm:$0xff] %v814
        %817 = vst [vmem:[#allocation4 + $0x8] sm:$0xff] %v815
        %818 = vst.msk [vmem:[#allocation2] sm:$0xff] %vm754, %v712
        %819 = vst.msk [vmem:[#allocation2 + $0x8] sm:$0xff] %vm754, %v713
        // Predicated region
        $region65: #{tpu_custom_call.1} parent=43 // pred_check
          %p820 = pneg %p328
        $region66: #{tpu_custom_call.1} parent=43 // pred_check_branch
          %822 = sbr.rel (%p820) target = $region68
        $region67: #{tpu_custom_call.1} parent=43 // pred_region
          %v823 = vld [vmem:[#allocation4] sm:$0xff]
          %v824 = vld [vmem:[#allocation4 + $0x8] sm:$0xff]
          %v825 = vld [vmem:[#allocation3] sm:$0xff]
          %v826 = vld [vmem:[#allocation3 + $0x8] sm:$0xff]
          %v827 = vrcp.pop %v825
          %v828 = vrcp.pop %v826
          %830 = vset.pattern.permute.xlu0 0
          %831 = vperm.xlu0 %830, %v827
          %v832 = vpop.permute.xlu0 %831
          %835 = vset.pattern.permute.xlu0 0
          %836 = vperm.xlu0 %835, %v828
          %v837 = vpop.permute.xlu0 %836
          %v839 = vmul.f32 %v823, %v832
          %v840 = vmul.f32 %v824, %v837
          %v841 = vpack.c.bf16 %v840, %v839
          %v842 = vld [vmem:[#allocation11] sm:$0xf]
          %v843 = vld [vmem:[#allocation11 + $0x4] sm:$0xf]
          %v844 = vld [vmem:[#allocation11 + $0x8] sm:$0xf]
          %v845 = vld [vmem:[#allocation11 + $0xc] sm:$0xf]
          %v846 = vld [vmem:[#allocation11 + $0x10] sm:$0xf]
          %v847 = vld [vmem:[#allocation11 + $0x14] sm:$0xf]
          %v848 = vld [vmem:[#allocation11 + $0x18] sm:$0xf]
          %v849 = vld [vmem:[#allocation11 + $0x1c] sm:$0xf]
          %v850 = vld [vmem:[#allocation11 + $0x20] sm:$0xf]
          %v851 = vld [vmem:[#allocation11 + $0x24] sm:$0xf]
          %v852 = vld [vmem:[#allocation11 + $0x28] sm:$0xf]
          %v853 = vld [vmem:[#allocation11 + $0x2c] sm:$0xf]
          %v854 = vld [vmem:[#allocation11 + $0x30] sm:$0xf]
          %v855 = vld [vmem:[#allocation11 + $0x34] sm:$0xf]
          %v856 = vld [vmem:[#allocation11 + $0x38] sm:$0xf]
          %v857 = vld [vmem:[#allocation11 + $0x3c] sm:$0xf]
          %v858 = vld [vmem:[%s5] sm:$0x1]
          %v860 = vlaneseq
          %v861 = vshrl.u32 %v860, 7
          %v862 = vsub.s32 0, %v861
          %v863 = vrot.slane %v858, %v862
          %v881 = vunpack.c.l.b16 %v842
          %v882 = vunpack.c.l.b16 %v843
          %v883 = vunpack.c.l.b16 %v844
          %v884 = vunpack.c.l.b16 %v845
          %v885 = vunpack.c.l.b16 %v846
          %v886 = vunpack.c.l.b16 %v847
          %v887 = vunpack.c.l.b16 %v848
          %v888 = vunpack.c.l.b16 %v849
          %v889 = vunpack.c.l.b16 %v850
          %v890 = vunpack.c.l.b16 %v851
          %v891 = vunpack.c.l.b16 %v852
          %v892 = vunpack.c.l.b16 %v853
          %v893 = vunpack.c.l.b16 %v854
          %v894 = vunpack.c.l.b16 %v855
          %v895 = vunpack.c.l.b16 %v856
          %v896 = vunpack.c.l.b16 %v857
          %v897 = vpack.c.b16 %v882, %v881
          %v898 = vpack.c.b16 %v884, %v883
          %v899 = vpack.c.b16 %v886, %v885
          %v900 = vpack.c.b16 %v888, %v887
          %v901 = vpack.c.b16 %v890, %v889
          %v902 = vpack.c.b16 %v892, %v891
          %v903 = vpack.c.b16 %v894, %v893
          %v904 = vpack.c.b16 %v896, %v895
          %913 = vmatprep.subr.bf16.mxu0 0
          %914 = vmatpush1.bf16.msra.mxu0 %v904
          %915 = vmatprep.subr.bf16.mxu0 0
          %916 = vmatpush1.bf16.msra.mxu0 %v903
          %917 = vmatprep.subr.bf16.mxu0 0
          %918 = vmatpush1.bf16.msra.mxu0 %v902
          %919 = vmatprep.subr.bf16.mxu0 0
          %920 = vmatpush1.bf16.msra.mxu0 %v901
          %921 = vmatprep.subr.bf16.mxu0 0
          %922 = vmatpush1.bf16.msra.mxu0 %v900
          %923 = vmatprep.subr.bf16.mxu0 0
          %924 = vmatpush1.bf16.msra.mxu0 %v899
          %925 = vmatprep.subr.bf16.mxu0 0
          %926 = vmatpush1.bf16.msra.mxu0 %v898
          %927 = vmatprep.subr.bf16.mxu0 0
          %928 = vmatpush1.bf16.msra.mxu0 %v897
          %929 = vmatprep.subr.bf16.mxu0 0
          %930 = vmatpush2.bf16.msra.mxu0 0
          %931 = vmatprep.subr.bf16.mxu0 0
          %932 = vmatpush2.bf16.msra.mxu0 0
          %933 = vmatprep.subr.bf16.mxu0 0
          %934 = vmatpush2.bf16.msra.mxu0 0
          %935 = vmatprep.subr.bf16.mxu0 0
          %936 = vmatpush2.bf16.msra.mxu0 0
          %937 = vmatprep.subr.bf16.mxu0 0
          %938 = vmatpush2.bf16.msra.mxu0 0
          %939 = vmatprep.subr.bf16.mxu0 0
          %940 = vmatpush2.bf16.msra.mxu0 0
          %941 = vmatprep.subr.bf16.mxu0 0
          %942 = vmatpush2.bf16.msra.mxu0 0
          %943 = vmatprep.subr.bf16.mxu0 0
          %944 = vmatpush2.bf16.msra.mxu0 0
          %945 = vmatprep.mubr.bf16.mxu0 0
          %946 = vmatmul.mubr.bf16.gmra.mxu0 %v841
          %v947 = vpop.f32.mrf.mxu0
          %v948 = vadd.f32 %v863, %v947
          %v949 = vpop.f32.mrf.mxu0
          %v950 = vpop.f32.mrf.mxu0
          %v951 = vadd.f32 %v863, %v950
          %v952 = vpop.f32.mrf.mxu0
          %953 = vdwg.mxu0
          %954 = vst [vmem:[%s325] sm:$0xff] %v948
          %955 = vst [vmem:[%s325 + $0x8] sm:$0xff] %v951
        $region68: #{tpu_custom_call.1} parent=43 // pred_fallthru
          _
        %s956 = sand.u32 %s178, 1
        %s957 = scalar_lea.sflag [#allocation7], %s956
        %s958 = sand.u32 %s178, 1
        %s959 = smul.addr %s958, 16
        %s960 = scalar_lea.vmem [#allocation13], %s959
        // Predicated region
        $region69: #{tpu_custom_call.1} parent=43 // pred_check
          %p961 = pneg %p188
        $region70: #{tpu_custom_call.1} parent=43 // pred_check_branch
          %963 = sbr.rel (%p961) target = $region72
        $region71: #{tpu_custom_call.1} parent=43 // pred_region
          %s965 = ssub.s32 256, 256
          %966 = vsyncadd %s957, %s965
          %s967 = smul.addr %s29, 2
          %s968 = smul.addr %s967, 128
          %s969 = scalar_lea.hbm %s6, %s968
          %s970 = sshll.u32 %s960, 4
          %s971 = int_to_ptr.vmem [resolvable:$true] %s970
          %976 = dma.vmem_to_hbm [thread:$0]  %s971, 256, %s969, %s957, 128, 128, 8
        $region72: #{tpu_custom_call.1} parent=43 // pred_fallthru
          _
      $region44: #{tpu_custom_call.1} parent=5 // pred_fallthru
        _
      %p977 = scmp.le.s32.totalorder 2, %s20
      // Predicated region
      $region73: #{tpu_custom_call.1} parent=5 // pred_check
        %p978 = pneg %p977
      $region74: #{tpu_custom_call.1} parent=5 // pred_check_branch
        %980 = sbr.rel (%p978) target = $region76
      $region75: #{tpu_custom_call.1} parent=5 // pred_region
        %s981 = ssub.s32 %s20, 2
        // Predicated region
        $region77: #{tpu_custom_call.1} parent=75 // pred_check
          %p982 = pneg %p194
        $region78: #{tpu_custom_call.1} parent=75 // pred_check_branch
          %984 = sbr.rel (%p982) target = $region80
        $region79: #{tpu_custom_call.1} parent=75 // pred_region
          %s985 = sand.u32 %s179, 1
          %s986 = scalar_lea.sflag [#allocation7], %s985
          %s987 = sand.u32 %s179, 1
          %s988 = smul.addr %s987, 16
          %s989 = scalar_lea.vmem [#allocation13], %s988
          %990 = dma.done %s986, 256
        $region80: #{tpu_custom_call.1} parent=75 // pred_fallthru
          _
      $region76: #{tpu_custom_call.1} parent=5 // pred_fallthru
        _
    $region6: #{tpu_custom_call.1} parent=1 // loop_footer
      %s24 = sadd.s32 1, %s20
    $region7: #{tpu_custom_call.1} parent=1 // loop_footer_branch
      %19 = sbr.rel target = $region3
    $region8: #{tpu_custom_call.1} parent=1 // loop_exit
      _
    %991 = vsyncpa [#allocation6], 1
    %s992 = scalar_lea.sflag [#allocation6], 1
    %993 = vsyncpa %s992, 1
    %994 = vsyncpa [#allocation9], 1
    %995 = vsyncpa [#allocation12], 1
    %996 = vsyncpa [#allocation7], 1
    %s997 = scalar_lea.sflag [#allocation7], 1
    %998 = vsyncpa %s997, 1

</llo_original>
